<compile_context>
chip_gen: v7x
topology: tpu7x:2x2x1
jax: 0.10.0
libtpu: 0.0.40
codegen_flags: <defaults>
</compile_context>

<pallas_src>
import jax
import jax.numpy as jnp
from jax.experimental import pallas as pl
from jax.experimental.pallas import tpu as pltpu

DROPOUT_P = 0.75           # torch drop probability
KEEP_P = 1.0 - DROPOUT_P   # 0.25
KEEP_SCALE = 1.0 / KEEP_P  # 4.0


def vae_fwd_kernel(x_ref, u_ref, wenc_ref, wd_ref, out_ref):
    # ---- Encoder (3 bias-free linears folded into one matmul) + ReLU ----
    rates = jnp.maximum(
        jnp.dot(x_ref[...], wenc_ref[...], preferred_element_type=jnp.float32),
        0.0,
    )
    # ---- Dropout(p=0.75), training mode (inverted dropout), + 0.01 ----
    keep = u_ref[...] < KEEP_P
    rates = jnp.where(keep, rates * KEEP_SCALE, 0.0) + 0.01
    # ---- Decoder: bias-free linear ----
    # NOTE: D_out < 128 lanes -> masked stores; could pad D_out to 128 in the
    # wrapper for a lane-dense out_spec if this ever becomes store-bound.
    out_ref[...] = jnp.dot(rates, wd_ref[...], preferred_element_type=jnp.float32)


def prepare_params(w1, w2, w3, wd):
    """One-time weight prep (hoisted out of the per-call path).

    w1/w2/w3/wd are in PyTorch Linear layout (out_features, in_features).
    Returns:
      w_enc: (D_in, latent)  == W1^T @ W2^T @ W3^T
      wd_t : (latent, D_out) == Wd^T
    """
    w_enc = w1.T @ w2.T @ w3.T
    wd_t = wd.T
    return w_enc, wd_t


def vae_forward(x, w_enc, wd_t, dropout_key, *, tile_b=1024):
    """x: (B, D_in) float32; w_enc: (D_in, latent); wd_t: (latent, D_out)."""
    B, d_in = x.shape
    latent = w_enc.shape[1]
    d_out = wd_t.shape[1]

    tb = min(tile_b, B)
    pad = (-B) % tb
    if pad:
        x = jnp.pad(x, ((0, pad), (0, 0)))
    bp = B + pad

    # Per-row dropout uniforms (distinct per grid tile automatically).
    u = jax.random.uniform(dropout_key, (bp, latent), dtype=jnp.float32)

    out = pl.pallas_call(
        vae_fwd_kernel,
        out_shape=jax.ShapeDtypeStruct((bp, d_out), jnp.float32),
        grid=(bp // tb,),
        in_specs=[
            pl.BlockSpec((tb, d_in), lambda i: (i, 0)),      # x tile
            pl.BlockSpec((tb, latent), lambda i: (i, 0)),    # dropout uniforms tile
            pl.BlockSpec((d_in, latent), lambda i: (0, 0)),  # W_enc (VMEM-resident)
            pl.BlockSpec((latent, d_out), lambda i: (0, 0)), # Wd^T  (VMEM-resident)
        ],
        out_specs=pl.BlockSpec((tb, d_out), lambda i: (i, 0)),
        compiler_params=pltpu.CompilerParams(
            dimension_semantics=("parallel",),
        ),
    )(x, u, w_enc, wd_t)

    return out[:B] if pad else out


if __name__ == "__main__":
    # Small, forward-consistent shapes:
    #   input_size = output_size = 32, args.layers = [64, 32],
    #   args.latent_shape = (4, 4) -> latent_size = 16, batch = 8
    B = 8
    input_size = 32
    layers = (64, 32)
    latent_size = 4 * 4
    output_size = input_size

    key = jax.random.PRNGKey(0)
    kx, k1, k2, k3, kd, kdrop = jax.random.split(key, 6)

    x = jax.random.normal(kx, (B, input_size), dtype=jnp.float32)
    # PyTorch Linear weight layout: (out_features, in_features)
    w1 = jax.random.normal(k1, (layers[0], input_size), dtype=jnp.float32) * 0.1
    w2 = jax.random.normal(k2, (layers[1], layers[0]), dtype=jnp.float32) * 0.1
    w3 = jax.random.normal(k3, (latent_size, layers[1]), dtype=jnp.float32) * 0.1
    wd = jax.random.normal(kd, (output_size, latent_size), dtype=jnp.float32) * 0.1

    # One-time parameter prep (hoisted out of the per-call path).
    w_enc, wd_t = prepare_params(w1, w2, w3, wd)

    out = vae_forward(x, w_enc, wd_t, kdrop)
    jax.block_until_ready(out)
    assert out.shape == (B, output_size)
    print("KERNEL_OK")
</pallas_src>

<mosaic_0001>
module attributes {stable_mosaic.version = 11 : i64} {
  func.func @vae_fwd_kernel(%arg0: i32, %arg1: memref<8x32xf32, #tpu.memory_space<vmem>>, %arg2: memref<8x16xf32, #tpu.memory_space<vmem>>, %arg3: memref<32x16xf32, #tpu.memory_space<vmem>>, %arg4: memref<16x32xf32, #tpu.memory_space<vmem>>, %arg5: memref<8x32xf32, #tpu.memory_space<vmem>>) attributes {dimension_semantics = [#tpu.dimension_semantics<parallel>], iteration_bounds = array<i64: 1>, scalar_prefetch = 0 : i64, scratch_operands = 0 : i64, tpu.core_type = #tpu.core_type<tc>, window_params = [{transform_indices = @transform_0, window_bounds = array<i64: 8, 32>}, {transform_indices = @transform_1, window_bounds = array<i64: 8, 16>}, {pipeline_mode = #tpu.pipeline_mode<synchronous>, transform_indices = @transform_2, window_bounds = array<i64: 32, 16>}, {pipeline_mode = #tpu.pipeline_mode<synchronous>, transform_indices = @transform_3, window_bounds = array<i64: 16, 32>}, {transform_indices = @transform_4, window_bounds = array<i64: 8, 32>}]} {
    %c0 = arith.constant 0 : index
    %c0_0 = arith.constant 0 : index
    %0 = vector.load %arg1[%c0, %c0_0] : memref<8x32xf32, #tpu.memory_space<vmem>>, vector<8x32xf32>
    %c0_1 = arith.constant 0 : index
    %c0_2 = arith.constant 0 : index
    %1 = vector.load %arg3[%c0_1, %c0_2] : memref<32x16xf32, #tpu.memory_space<vmem>>, vector<32x16xf32>
    %cst = arith.constant dense<0.000000e+00> : vector<8x16xf32>
    %2 = tpu.matmul %0, %1, %cst {dimension_numbers = #tpu.dot_dimension_numbers<[1], [0], [0], [1], [0, 0, 1, 1], [], []>} : vector<8x32xf32>, vector<32x16xf32>, vector<8x16xf32> -> vector<8x16xf32>
    %cst_3 = arith.constant 0.000000e+00 : f32
    %3 = vector.broadcast %cst_3 : f32 to vector<8x16xf32>
    %4 = arith.maximumf %2, %3 : vector<8x16xf32>
    %c0_4 = arith.constant 0 : index
    %c0_5 = arith.constant 0 : index
    %5 = vector.load %arg2[%c0_4, %c0_5] : memref<8x16xf32, #tpu.memory_space<vmem>>, vector<8x16xf32>
    %cst_6 = arith.constant 2.500000e-01 : f32
    %6 = vector.broadcast %cst_6 : f32 to vector<8x16xf32>
    %7 = arith.cmpf olt, %5, %6 : vector<8x16xf32>
    %cst_7 = arith.constant 4.000000e+00 : f32
    %8 = vector.broadcast %cst_7 : f32 to vector<8x16xf32>
    %9 = arith.mulf %4, %8 : vector<8x16xf32>
    %cst_8 = arith.constant 0.000000e+00 : f32
    %10 = vector.broadcast %cst_8 : f32 to vector<8x16xf32>
    %11 = arith.select %7, %9, %10 : vector<8x16xi1>, vector<8x16xf32>
    %cst_9 = arith.constant 0.00999999977 : f32
    %12 = vector.broadcast %cst_9 : f32 to vector<8x16xf32>
    %13 = arith.addf %11, %12 : vector<8x16xf32>
    %c0_10 = arith.constant 0 : index
    %c0_11 = arith.constant 0 : index
    %14 = vector.load %arg4[%c0_10, %c0_11] : memref<16x32xf32, #tpu.memory_space<vmem>>, vector<16x32xf32>
    %cst_12 = arith.constant dense<0.000000e+00> : vector<8x32xf32>
    %15 = tpu.matmul %13, %14, %cst_12 {dimension_numbers = #tpu.dot_dimension_numbers<[1], [0], [0], [1], [0, 0, 1, 1], [], []>} : vector<8x16xf32>, vector<16x32xf32>, vector<8x32xf32> -> vector<8x32xf32>
    %c0_13 = arith.constant 0 : index
    %c0_14 = arith.constant 0 : index
    %16 = vector.load %arg5[%c0_13, %c0_14] : memref<8x32xf32, #tpu.memory_space<vmem>>, vector<8x32xf32>
    tpu.vector_store %arg5[%c0_13, %c0_14], %15 {strides = array<i32>} : memref<8x32xf32, #tpu.memory_space<vmem>>, vector<8x32xf32>,
    return
  }
  func.func @transform_0(%arg0: i32) -> (i32, i32) {
    %c0_i32 = arith.constant 0 : i32
    %c0_i32_0 = arith.constant 0 : i32
    return %arg0, %c0_i32 : i32, i32
  }
  func.func @transform_1(%arg0: i32) -> (i32, i32) {
    %c0_i32 = arith.constant 0 : i32
    %c0_i32_0 = arith.constant 0 : i32
    return %arg0, %c0_i32 : i32, i32
  }
  func.func @transform_2(%arg0: i32) -> (i32, i32) {
    %c0_i32 = arith.constant 0 : i32
    %c0_i32_0 = arith.constant 0 : i32
    %c0_i32_1 = arith.constant 0 : i32
    return %c0_i32, %c0_i32_0 : i32, i32
  }
  func.func @transform_3(%arg0: i32) -> (i32, i32) {
    %c0_i32 = arith.constant 0 : i32
    %c0_i32_0 = arith.constant 0 : i32
    %c0_i32_1 = arith.constant 0 : i32
    return %c0_i32, %c0_i32_0 : i32, i32
  }
  func.func @transform_4(%arg0: i32) -> (i32, i32) {
    %c0_i32 = arith.constant 0 : i32
    %c0_i32_0 = arith.constant 0 : i32
    return %arg0, %c0_i32 : i32, i32
  }
}

</mosaic_0001>

<llo_original>
// kernel: tpu_custom_call.1
$region0: #{tpu_custom_call.1}
  #allocation0 [shape = 'u32[]', space=smem, size = 0x4, offset = 0x4, fixed_abs, tag = 'smem constant byte address 0x4 - core index']
  #allocation1 [shape = 'u32[144,128]{1,0:T(1,128)}', space=vmem, size = 0x12000, scoped, tag = 'internal scratch']
  %s0 = inlined_call_operand.vmem [shape: f32[8,32], index: 0, kind: input, shape index: {}]
  %s1 = inlined_call_operand.vmem [shape: f32[8,16], index: 1, kind: input, shape index: {}]
  %s2 = inlined_call_operand.vmem [shape: f32[32,16], index: 2, kind: input, shape index: {}]
  %s3 = inlined_call_operand.vmem [shape: f32[16,32], index: 3, kind: input, shape index: {}]
  %s4 = inlined_call_operand.hbm [shape: f32[8,32], index: 4, kind: output, shape index: {}]
  %s5 = sld [smem:[#allocation0]]
  $region26: #{tpu_custom_call.1} parent=0
    _
  %s7 = ssub.s32 1, %s5
  %s8 = scalar_select 0, %s7, %s5
  $region1: #{tpu_custom_call.1} parent=0
    #allocation2 [shape = 'u8[4096]{0}', space=vmem, size = 0x1000, scoped, tag = 'output window, operand 0, single buffered']
    #allocation3 [shape = 's32[1]{0}', space=sflag, size = 0x4, scoped, tag = 'scoped memory for tpu_custom_call.1']
    %9 = vsyncpa [#allocation3], 0
    // Predicated region
    $region2: #{tpu_custom_call.1} parent=1 // pred_check
      _
    $region3: #{tpu_custom_call.1} parent=1 // pred_check_branch
      %11 = sbr.rel (0) target = $region5
    $region4: #{tpu_custom_call.1} parent=1 // pred_region
      _
    $region5: #{tpu_custom_call.1} parent=1 // pred_fallthru
      _
    // Predicated region
    $region6: #{tpu_custom_call.1} parent=1 // pred_check
      _
    $region7: #{tpu_custom_call.1} parent=1 // pred_check_branch
      %13 = sbr.rel (0) target = $region9
    $region8: #{tpu_custom_call.1} parent=1 // pred_region
      _
    $region9: #{tpu_custom_call.1} parent=1 // pred_fallthru
      _
    // Predicated region
    $region10: #{tpu_custom_call.1} parent=1 // pred_check
      _
    $region11: #{tpu_custom_call.1} parent=1 // pred_check_branch
      %15 = sbr.rel (0) target = $region13
    $region12: #{tpu_custom_call.1} parent=1 // pred_region
      _
    $region13: #{tpu_custom_call.1} parent=1 // pred_fallthru
      _
    // Predicated region
    $region14: #{tpu_custom_call.1} parent=1 // pred_check
      _
    $region15: #{tpu_custom_call.1} parent=1 // pred_check_branch
      %17 = sbr.rel (0) target = $region17
    $region16: #{tpu_custom_call.1} parent=1 // pred_region
      _
    $region17: #{tpu_custom_call.1} parent=1 // pred_fallthru
      _
    %v18 = vld [vmem:[%s0] sm:$0xff]
    %v19 = vld [vmem:[%s2] sm:$0xff]
    %v20 = vld [vmem:[%s2 + $0x8] sm:$0xff]
    %v21 = vld [vmem:[%s2 + $0x10] sm:$0xff]
    %v22 = vld [vmem:[%s2 + $0x18] sm:$0xff]
    %vm23 = vcmask 261120
    %v25 = vsel %vm23, %v18, 0
    %27 = vmatprep.subr.mxu0 0.0
    %28 = vmatpush1.msra.mxu0 %v19
    %29 = vmatprep.subr.mxu0 0.0
    %30 = vmatpush1.msra.mxu0 %v20
    %31 = vmatprep.subr.mxu0 0.0
    %32 = vmatpush1.msra.mxu0 %v21
    %33 = vmatprep.subr.mxu0 0.0
    %34 = vmatpush1.msra.mxu0 %v22
    %35 = vmatprep.subr.mxu0 0.0
    %36 = vmatpush1.msra.mxu0 0.0
    %37 = vmatprep.subr.mxu0 0.0
    %38 = vmatpush1.msra.mxu0 0.0
    %39 = vmatprep.subr.mxu0 0.0
    %40 = vmatpush1.msra.mxu0 0.0
    %41 = vmatprep.subr.mxu0 0.0
    %42 = vmatpush1.msra.mxu0 0.0
    %43 = vmatprep.subr.mxu0 0.0
    %44 = vmatpush1.msra.mxu0 0.0
    %45 = vmatprep.subr.mxu0 0.0
    %46 = vmatpush1.msra.mxu0 0.0
    %47 = vmatprep.subr.mxu0 0.0
    %48 = vmatpush1.msra.mxu0 0.0
    %49 = vmatprep.subr.mxu0 0.0
    %50 = vmatpush1.msra.mxu0 0.0
    %51 = vmatprep.subr.mxu0 0.0
    %52 = vmatpush1.msra.mxu0 0.0
    %53 = vmatprep.subr.mxu0 0.0
    %54 = vmatpush1.msra.mxu0 0.0
    %55 = vmatprep.subr.mxu0 0.0
    %56 = vmatpush1.msra.mxu0 0.0
    %57 = vmatprep.subr.mxu0 0.0
    %58 = vmatpush1.msra.mxu0 0.0
    %59 = vmatprep.subr.mxu0 0.0
    %60 = vmatpush1.msra.mxu0 0.0
    %61 = vmatprep.subr.mxu0 0.0
    %62 = vmatpush1.msra.mxu0 0.0
    %63 = vmatprep.subr.mxu0 0.0
    %64 = vmatpush1.msra.mxu0 0.0
    %65 = vmatprep.subr.mxu0 0.0
    %66 = vmatpush1.msra.mxu0 0.0
    %67 = vmatprep.subr.mxu0 0.0
    %68 = vmatpush1.msra.mxu0 0.0
    %69 = vmatprep.subr.mxu0 0.0
    %70 = vmatpush1.msra.mxu0 0.0
    %71 = vmatprep.subr.mxu0 0.0
    %72 = vmatpush1.msra.mxu0 0.0
    %73 = vmatprep.subr.mxu0 0.0
    %74 = vmatpush1.msra.mxu0 0.0
    %75 = vmatprep.subr.mxu0 0.0
    %76 = vmatpush1.msra.mxu0 0.0
    %77 = vmatprep.subr.mxu0 0.0
    %78 = vmatpush1.msra.mxu0 0.0
    %79 = vmatprep.subr.mxu0 0.0
    %80 = vmatpush1.msra.mxu0 0.0
    %81 = vmatprep.subr.mxu0 0.0
    %82 = vmatpush1.msra.mxu0 0.0
    %83 = vmatprep.subr.mxu0 0.0
    %84 = vmatpush1.msra.mxu0 0.0
    %85 = vmatprep.subr.mxu0 0.0
    %86 = vmatpush1.msra.mxu0 0.0
    %87 = vmatprep.subr.mxu0 0.0
    %88 = vmatpush1.msra.mxu0 0.0
    %89 = vmatprep.subr.mxu0 0.0
    %90 = vmatpush1.msra.mxu0 0.0
    %91 = vmatprep.mubr.f32.mxu0 0.0
    %92 = vmatmul.mubr.f32.gmra.mrb[0].mxu0 %v25
    %v93 = vpop.f32.mrb[0].mxu0
    %v94 = vadd.f32 0.0, %v93
    %v95 = vpop.f32.mrb[0].mxu0
    %96 = vdwg.mxu0
    %v97 = vmax.f32 %v94, 0.0
    %v98 = vld [vmem:[%s1] sm:$0xff]
    %vm99 = vcmp.lt.f32.partialorder %v98, 0.25
    %v100 = vmul.f32 %v97, 4.0
    %v101 = vsel %vm99, %v100, 0.0
    %v102 = vadd.f32 %v101, 0.01
    %v103 = vld [vmem:[%s3] sm:$0xff]
    %v104 = vld [vmem:[%s3 + $0x8] sm:$0xff]
    %vm105 = vcmask 130048
    %v107 = vsel %vm105, %v102, 0
    %109 = vmatprep.subr.mxu0 0.0
    %110 = vmatpush1.msra.mxu0 %v103
    %111 = vmatprep.subr.mxu0 0.0
    %112 = vmatpush1.msra.mxu0 %v104
    %113 = vmatprep.subr.mxu0 0.0
    %114 = vmatpush1.msra.mxu0 0.0
    %115 = vmatprep.subr.mxu0 0.0
    %116 = vmatpush1.msra.mxu0 0.0
    %117 = vmatprep.subr.mxu0 0.0
    %118 = vmatpush1.msra.mxu0 0.0
    %119 = vmatprep.subr.mxu0 0.0
    %120 = vmatpush1.msra.mxu0 0.0
    %121 = vmatprep.subr.mxu0 0.0
    %122 = vmatpush1.msra.mxu0 0.0
    %123 = vmatprep.subr.mxu0 0.0
    %124 = vmatpush1.msra.mxu0 0.0
    %125 = vmatprep.subr.mxu0 0.0
    %126 = vmatpush1.msra.mxu0 0.0
    %127 = vmatprep.subr.mxu0 0.0
    %128 = vmatpush1.msra.mxu0 0.0
    %129 = vmatprep.subr.mxu0 0.0
    %130 = vmatpush1.msra.mxu0 0.0
    %131 = vmatprep.subr.mxu0 0.0
    %132 = vmatpush1.msra.mxu0 0.0
    %133 = vmatprep.subr.mxu0 0.0
    %134 = vmatpush1.msra.mxu0 0.0
    %135 = vmatprep.subr.mxu0 0.0
    %136 = vmatpush1.msra.mxu0 0.0
    %137 = vmatprep.subr.mxu0 0.0
    %138 = vmatpush1.msra.mxu0 0.0
    %139 = vmatprep.subr.mxu0 0.0
    %140 = vmatpush1.msra.mxu0 0.0
    %141 = vmatprep.subr.mxu0 0.0
    %142 = vmatpush1.msra.mxu0 0.0
    %143 = vmatprep.subr.mxu0 0.0
    %144 = vmatpush1.msra.mxu0 0.0
    %145 = vmatprep.subr.mxu0 0.0
    %146 = vmatpush1.msra.mxu0 0.0
    %147 = vmatprep.subr.mxu0 0.0
    %148 = vmatpush1.msra.mxu0 0.0
    %149 = vmatprep.subr.mxu0 0.0
    %150 = vmatpush1.msra.mxu0 0.0
    %151 = vmatprep.subr.mxu0 0.0
    %152 = vmatpush1.msra.mxu0 0.0
    %153 = vmatprep.subr.mxu0 0.0
    %154 = vmatpush1.msra.mxu0 0.0
    %155 = vmatprep.subr.mxu0 0.0
    %156 = vmatpush1.msra.mxu0 0.0
    %157 = vmatprep.subr.mxu0 0.0
    %158 = vmatpush1.msra.mxu0 0.0
    %159 = vmatprep.subr.mxu0 0.0
    %160 = vmatpush1.msra.mxu0 0.0
    %161 = vmatprep.subr.mxu0 0.0
    %162 = vmatpush1.msra.mxu0 0.0
    %163 = vmatprep.subr.mxu0 0.0
    %164 = vmatpush1.msra.mxu0 0.0
    %165 = vmatprep.subr.mxu0 0.0
    %166 = vmatpush1.msra.mxu0 0.0
    %167 = vmatprep.subr.mxu0 0.0
    %168 = vmatpush1.msra.mxu0 0.0
    %169 = vmatprep.subr.mxu0 0.0
    %170 = vmatpush1.msra.mxu0 0.0
    %171 = vmatprep.subr.mxu0 0.0
    %172 = vmatpush1.msra.mxu0 0.0
    %173 = vmatprep.mubr.f32.mxu0 0.0
    %174 = vmatmul.mubr.f32.gmra.mrb[0].mxu0 %v107
    %v175 = vpop.f32.mrb[0].mxu0
    %v176 = vadd.f32 0.0, %v175
    %v177 = vpop.f32.mrb[0].mxu0
    %178 = vdwg.mxu0
    %179 = vst.msk [vmem:[#allocation2] sm:$0xff] %vm23, %v176
    // Predicated region
    $region18: #{tpu_custom_call.1} parent=1 // pred_check
      _
    $region19: #{tpu_custom_call.1} parent=1 // pred_check_branch
      %181 = sbr.rel (0) target = $region21
    $region20: #{tpu_custom_call.1} parent=1 // pred_region
      %s183 = ssub.s32 128, 128
      %184 = vsyncadd [#allocation3], %s183
      %s186 = sshll.u32 [#allocation2], 4
      %s187 = int_to_ptr.vmem [resolvable:$true] %s186
      %189 = dma.vmem_to_hbm [thread:$0]  %s187, 128, %s4, [#allocation3]
    $region21: #{tpu_custom_call.1} parent=1 // pred_fallthru
      _
    // Predicated region
    $region22: #{tpu_custom_call.1} parent=1 // pred_check
      _
    $region23: #{tpu_custom_call.1} parent=1 // pred_check_branch
      %191 = sbr.rel (0) target = $region25
    $region24: #{tpu_custom_call.1} parent=1 // pred_region
      %192 = dma.done [#allocation3], 128
    $region25: #{tpu_custom_call.1} parent=1 // pred_fallthru
      _
    %193 = vsyncpa [#allocation3], 1

</llo_original>
